<compile_context>
chip_gen: v7x
topology: tpu7x:2x2x1
jax: 0.10.0
libtpu: 0.0.40
codegen_flags: <defaults>
</compile_context>

<pallas_src>
import functools
import math

import jax
import jax.numpy as jnp
import numpy as np
from jax.experimental import pallas as pl
from jax.experimental.pallas import tpu as pltpu

_LANE_CAP = 2048          # max packed lane width for the repacked (rows, L) layout


# --------------------------- chip-dependent sizing ---------------------------

@functools.lru_cache(maxsize=None)
def _tpu_vmem_capacity():
    """Per-TensorCore VMEM bytes (conservative default if introspection fails)."""
    try:
        cap = getattr(pltpu.get_tpu_info(), "vmem_capacity_bytes", None)
        if cap:
            return int(cap)
    except Exception:
        pass
    return 64 << 20          # v7x per-TC VMEM; smallest of the current parts


@functools.lru_cache(maxsize=None)
def _target_block_elems():
    # ~2 MiB f32 per input buffer on 64 MiB parts (v7x), ~4 MiB on 128 MiB parts (v5e/v6e):
    # bigger tiles amortize the ~0.35 us per-grid-step overhead where VMEM allows it.
    return (1024 * 1024) if _tpu_vmem_capacity() >= (100 << 20) else (512 * 1024)


@functools.lru_cache(maxsize=None)
def _num_cores():
    """TensorCores per device for the reduce-path core split (best effort)."""
    try:
        info = pltpu.get_tpu_info()
        for attr in ("num_cores", "core_count", "num_tensorcores", "tensorcore_count"):
            v = getattr(info, attr, None)
            if v:
                return max(1, int(v))
    except Exception:
        pass
    try:
        v = getattr(jax.devices()[0], "num_cores", None)
        if v:
            return max(1, int(v))
    except Exception:
        pass
    # Unknown: keep a 2-way split.  On 1-TC chips this costs at most one extra clamped,
    # fully-masked block; on v7x it enables the 2x TensorCore split of the reduction.
    return 2


def _vmem_limit_bytes(block_in_bytes, block_out_bytes, extra_bytes):
    """Computed VMEM budget: double-buffered blocks + scratch, 1.5x + 4 MiB headroom."""
    footprint = 2 * (block_in_bytes + block_out_bytes) + extra_bytes
    lim = int(footprint * 1.5) + (4 << 20)
    cap = int(_tpu_vmem_capacity() * 0.75)   # never request the whole physical VMEM
    return max(16 << 20, min(lim, cap))


def _sublane_req(dtype):
    """Second-to-last block-dim multiple required for this dtype's native tiling."""
    sz = np.dtype(dtype).itemsize
    if sz >= 4:
        return 8
    if sz == 2:
        return 16
    return 32


# ----------------------------- elementwise math ------------------------------

def _pow_static(p, gamma):
    """p ** gamma with a static Python-float gamma.

    Integer gammas stay on the VPU (plain multiplies).  Non-integer gamma uses
    exp(gamma*log(p)) with a clamp so p == 0 does not produce NaN (kornia computes
    p**gamma directly, so last-ulp differences are possible for p ~ 0).
    """
    ig = int(round(gamma))
    if float(ig) == float(gamma) and 0 <= ig <= 8:
        if ig == 0:
            return jnp.ones_like(p)
        r = p
        for _ in range(ig - 1):
            r = r * p
        return r
    return jnp.exp(gamma * jnp.log(jnp.maximum(p, 1e-30)))


def _focal_elementwise(x, t, scale_pos, scale_neg, gamma):
    """Per-element binary focal loss in f32.

    EUP budget: 1x exp, 1x log, 1x approximate reciprocal (plus one Newton step on the
    VPU, which restores ~f32 accuracy while keeping EUP pressure low).
    """
    e = jnp.exp(-jnp.abs(x))                  # exp(-|x|) in (0, 1]
    d = 1.0 + e
    l1p = jnp.log(d)                          # log(1 + exp(-|x|))
    log_p_pos = jnp.minimum(x, 0.0) - l1p     # log(sigmoid(x))
    log_p_neg = jnp.minimum(-x, 0.0) - l1p    # log(sigmoid(-x))
    r = pl.reciprocal(d, approx=True)         # EUP vrcp
    r = r * (2.0 - d * r)                     # one Newton step (VPU-only refinement)
    er = e * r
    p_pos = jnp.where(x >= 0.0, r, er)        # sigmoid(x)
    p_neg = jnp.where(x >= 0.0, er, r)        # sigmoid(-x)  (no 1-p cancellation)
    pos = scale_pos * (_pow_static(p_neg, gamma) * (t * log_p_pos))
    neg = scale_neg * (_pow_static(p_pos, gamma) * ((1.0 - t) * log_p_neg))
    return -(pos + neg)


# --------------------------------- kernels -----------------------------------

def _focal_none_kernel(*refs, alpha, gamma, has_pw):
    if has_pw:
        x_ref, t_ref, pw_ref, o_ref = refs
        scale_pos = pw_ref[...]               # (1, L) f32, alpha already folded on host
    else:
        x_ref, t_ref, o_ref = refs
        scale_pos = alpha
    x = x_ref[...].astype(jnp.float32)
    t = t_ref[...].astype(jnp.float32)        # narrow targets cast to f32 only here
    loss = _focal_elementwise(x, t, scale_pos, 1.0 - alpha, gamma)
    o_ref[...] = loss.astype(o_ref.dtype)


def _focal_reduce_kernel(*refs, alpha, gamma, valid_rows, tm, blocks_per_core,
                         has_pw, may_need_mask):
    if has_pw:
        x_ref, t_ref, pw_ref, o_ref, acc_ref = refs
        scale_pos = pw_ref[...]
    else:
        x_ref, t_ref, o_ref, acc_ref = refs
        scale_pos = alpha

    c = pl.program_id(0)          # "core" axis (parallel)
    i = pl.program_id(1)          # block axis within a core (arbitrary / reduction)

    @pl.when(i == 0)
    def _():
        acc_ref[...] = jnp.zeros_like(acc_ref)

    x = x_ref[...].astype(jnp.float32)
    t = t_ref[...].astype(jnp.float32)
    loss = _focal_elementwise(x, t, scale_pos, 1.0 - alpha, gamma)

    def _fold(v):
        # Fold into a vreg-shaped accumulator with pure VPU adds; the expensive
        # cross-lane reduction happens exactly once, in the finalizer.
        if tm % 8 == 0:
            return v.reshape(tm // 8, 8, v.shape[-1]).sum(axis=0)
        return v

    if not may_need_mask:
        acc_ref[...] += _fold(loss)
    else:
        blk = c * blocks_per_core + i                  # unclamped logical block index
        tail = (blk + 1) * tm > valid_rows             # only tail/overflow blocks mask

        @pl.when(jnp.logical_not(tail))
        def _():
            acc_ref[...] += _fold(loss)

        @pl.when(tail)
        def _():
            row_ids = blk * tm + jax.lax.broadcasted_iota(jnp.int32, (tm, 1), 0)
            acc_ref[...] += _fold(jnp.where(row_ids < valid_rows, loss, 0.0))

    @pl.when(i == blocks_per_core - 1)
    def _():
        total = jnp.sum(acc_ref[...])
        o_ref[...] = total + jnp.zeros_like(o_ref)     # replicate per-core partial


# --------------------------------- wrapper ------------------------------------

def _pack_layout(n_elems, w):
    """Pick a lane-dense (rows, L) flattening.  L is always a multiple of w."""
    if w % 128 != 0:
        base = (w * 128) // math.gcd(w, 128)           # lcm(w, 128)
        if n_elems % base == 0:
            L = base
            k = 2
            while base * k <= _LANE_CAP:
                if n_elems % (base * k) == 0:
                    L = base * k
                k += 1
            return n_elems // L, L
    # TODO(synk): for huge arrays with tiny W this fallback emits masked sub-128-lane
    # stores; a padded lane-dense layout would be faster but needs an extra HBM pass.
    return n_elems // w, w                             # fallback: class axis on lanes


def _pick_tm(rows, L, req):
    if rows <= req:
        return rows                                    # single (full-rows) block
    tm = min(rows, max(1, _target_block_elems() // L))
    return max(req, (tm // req) * req)


def binary_focal_loss_with_logits(input, target, alpha=0.25, gamma=2.0,
                                  reduction="none", eps=None, pos_weight=None):
    del eps  # deprecated in kornia; ignored
    logits = jnp.asarray(input)
    target = jnp.asarray(target)
    if target.dtype == jnp.bool_:
        # Keep the target narrow (1 B/elem); the f32 cast happens inside the kernel,
        # so no full-width HBM copy of the target is ever materialized.
        target = target.astype(jnp.int8)

    orig_shape = logits.shape
    W = orig_shape[-1]
    out_dtype = logits.dtype
    n_elems = int(np.prod(orig_shape))

    has_pw = pos_weight is not None
    if has_pw:
        pos_weight = jnp.asarray(pos_weight).reshape(-1)
        if pos_weight.shape[0] != W:
            raise ValueError("Expected pos_weight length to equal number of classes.")

    alpha = float(alpha)
    gamma = float(gamma)

    rows, L = _pack_layout(n_elems, W)
    req = max(_sublane_req(logits.dtype), _sublane_req(target.dtype))
    if reduction == "none":
        req = max(req, _sublane_req(out_dtype))
    tm = _pick_tm(rows, L, req)
    nblocks = pl.cdiv(rows, tm)

    x2 = logits.reshape(rows, L)
    t2 = target.reshape(rows, L)                        # native (possibly narrow) dtype
    operands = [x2, t2]
    if has_pw:
        # Fold the alpha scalar into the tiny (1, L) pos_weight row on the host.
        operands.append(
            (alpha * jnp.tile(pos_weight.astype(jnp.float32), L // W)).reshape(1, L))

    block_in = tm * L * (x2.dtype.itemsize + t2.dtype.itemsize)
    pw_bytes = (2 * L * 4) if has_pw else 0

    if reduction == "none":
        row_spec = pl.BlockSpec((tm, L), lambda i: (i, 0))
        in_specs = [row_spec, row_spec]
        if has_pw:
            in_specs.append(pl.BlockSpec((1, L), lambda i: (0, 0)))
        out = pl.pallas_call(
            functools.partial(_focal_none_kernel, alpha=alpha, gamma=gamma, has_pw=has_pw),
            out_shape=jax.ShapeDtypeStruct((rows, L), out_dtype),
            grid_spec=pltpu.PrefetchScalarGridSpec(
                num_scalar_prefetch=0,
                grid=(nblocks,),
                in_specs=in_specs,
                out_specs=row_spec,
            ),
            compiler_params=pltpu.CompilerParams(
                dimension_semantics=("parallel",),
                vmem_limit_bytes=_vmem_limit_bytes(
                    block_in, tm * L * np.dtype(out_dtype).itemsize, pw_bytes)),
        )(*operands)
        return out.reshape(orig_shape)

    if reduction in ("mean", "sum"):
        ncores = max(1, min(_num_cores(), nblocks))
        npc = pl.cdiv(nblocks, ncores)                  # blocks per core
        acc_rows = 8 if tm % 8 == 0 else tm
        may_need_mask = (ncores * npc * tm != rows)

        def _in_map(c, i):
            # Clamp so overflow iterations stay in-bounds; their rows are masked in-kernel.
            return (jnp.minimum(c * npc + i, nblocks - 1), 0)

        row_spec = pl.BlockSpec((tm, L), _in_map)
        in_specs = [row_spec, row_spec]
        if has_pw:
            in_specs.append(pl.BlockSpec((1, L), lambda c, i: (0, 0)))

        partials = pl.pallas_call(
            functools.partial(_focal_reduce_kernel, alpha=alpha, gamma=gamma,
                              valid_rows=rows, tm=tm, blocks_per_core=npc,
                              has_pw=has_pw, may_need_mask=may_need_mask),
            out_shape=jax.ShapeDtypeStruct((1, ncores * 128), jnp.float32),
            grid_spec=pltpu.PrefetchScalarGridSpec(
                num_scalar_prefetch=0,
                grid=(ncores, npc),
                in_specs=in_specs,
                out_specs=pl.BlockSpec((1, 128), lambda c, i: (0, c)),
                scratch_shapes=[pltpu.VMEM((acc_rows, L), jnp.float32)],
            ),
            compiler_params=pltpu.CompilerParams(
                # TODO(synk): on v7x, switch the leading axis to pltpu.CORE_PARALLEL if a
                # bundle dump shows plain "parallel" does not shard across the 2 TensorCores.
                dimension_semantics=("parallel", "arbitrary"),
                vmem_limit_bytes=_vmem_limit_bytes(
                    block_in, 2 * 128 * 4, acc_rows * L * 4 + pw_bytes)),
        )(*operands)

        total = jnp.sum(partials[0, ::128])             # one replicated value per core block
        if reduction == "mean":
            total = total / float(n_elems)
        return total.astype(out_dtype)

    raise NotImplementedError(f"Invalid reduction mode: {reduction}")


class BinaryFocalLossWithLogits:
    """JAX/Pallas equivalent of kornia's BinaryFocalLossWithLogits (forward pass)."""

    def __init__(self, alpha, gamma=2.0, reduction="none", pos_weight=None):
        self.alpha = alpha
        self.gamma = gamma
        self.reduction = reduction
        self.pos_weight = pos_weight

    def __call__(self, input, target):
        return binary_focal_loss_with_logits(input, target, self.alpha, self.gamma,
                                              self.reduction, pos_weight=self.pos_weight)


# --------------------------------- reference / test ----------------------------

def _reference(logits, target, alpha, gamma, reduction, pos_weight):
    W = logits.shape[-1]
    if pos_weight is None:
        pos_weight = jnp.ones((W,), dtype=logits.dtype)
    t = target.astype(logits.dtype)
    probs_pos = jax.nn.sigmoid(logits)
    probs_neg = jax.nn.sigmoid(-logits)
    lp = jax.nn.log_sigmoid(logits)
    ln = jax.nn.log_sigmoid(-logits)
    loss = (-alpha * pos_weight * probs_neg ** gamma * t * lp
            - (1 - alpha) * probs_pos ** gamma * (1.0 - t) * ln)
    if reduction == "mean":
        return jnp.mean(loss)
    if reduction == "sum":
        return jnp.sum(loss)
    return loss


if __name__ == "__main__":
    key = jax.random.PRNGKey(0)
    k1, k2, k3, k4, k5, k6 = jax.random.split(key, 6)
    RTOL, ATOL = 1e-3, 1e-5   # tolerance relaxed for the approximate-reciprocal path

    # --- main shape: (2, 4, 16, 16) -> lane-dense repack path (L = 2048, rows = 1) ---
    B, C, H, W = 2, 4, 16, 16
    logits = jax.random.normal(k1, (B, C, H, W), dtype=jnp.float32) * 3.0
    target = (jax.random.uniform(k2, (B, C, H, W)) > 0.5).astype(jnp.float32)
    pos_weight = jnp.linspace(0.5, 1.5, W, dtype=jnp.float32)
    for red in ("none", "mean", "sum"):
        mod = BinaryFocalLossWithLogits(alpha=0.25, gamma=2.0, reduction=red,
                                        pos_weight=pos_weight)
        out = jax.block_until_ready(mod(logits, target))
        ref = _reference(logits, target, 0.25, 2.0, red, pos_weight)
        np.testing.assert_allclose(np.asarray(out), np.asarray(ref), rtol=RTOL, atol=ATOL)

    # --- narrow (bool) targets: stay 1 B/elem in HBM, cast to f32 only inside the kernel ---
    target_b = jax.random.uniform(k2, (B, C, H, W)) > 0.5
    for red in ("none", "mean"):
        mod = BinaryFocalLossWithLogits(alpha=0.25, gamma=2.0, reduction=red)
        out = jax.block_until_ready(mod(logits, target_b))
        ref = _reference(logits, target_b.astype(jnp.float32), 0.25, 2.0, red, None)
        np.testing.assert_allclose(np.asarray(out), np.asarray(ref), rtol=RTOL, atol=ATOL)

    # --- multi-block shape: (9, 4, 32, 16) -> tm=8, partial tail block, core split ---
    logits_m = jax.random.normal(k3, (9, 4, 32, 16), dtype=jnp.float32) * 3.0
    target_m = (jax.random.uniform(k4, (9, 4, 32, 16)) > 0.5).astype(jnp.float32)
    for red in ("none", "mean", "sum"):
        mod = BinaryFocalLossWithLogits(alpha=0.25, gamma=2.0, reduction=red,
                                        pos_weight=pos_weight)
        out = jax.block_until_ready(mod(logits_m, target_m))
        ref = _reference(logits_m, target_m, 0.25, 2.0, red, pos_weight)
        np.testing.assert_allclose(np.asarray(out), np.asarray(ref), rtol=RTOL, atol=ATOL)

    # --- small odd shape: (1, 3, 5) -> narrow-lane fallback path, no pos_weight ---
    logits_s = jax.random.normal(k5, (1, 3, 5), dtype=jnp.float32) * 2.0
    target_s = (jax.random.uniform(k6, (1, 3, 5)) > 0.5).astype(jnp.float32)
    for red in ("none", "mean"):
        mod = BinaryFocalLossWithLogits(alpha=0.25, gamma=2.0, reduction=red)
        out = jax.block_until_ready(mod(logits_s, target_s))
        ref = _reference(logits_s, target_s, 0.25, 2.0, red, None)
        np.testing.assert_allclose(np.asarray(out), np.asarray(ref), rtol=RTOL, atol=ATOL)

    print("KERNEL_OK")
</pallas_src>

<mosaic_0001>
module attributes {stable_mosaic.version = 11 : i64} {
  func.func @_focal_none_kernel(%arg0: i32, %arg1: memref<1x2048xf32, #tpu.memory_space<vmem>>, %arg2: memref<1x2048xf32, #tpu.memory_space<vmem>>, %arg3: memref<1x2048xf32, #tpu.memory_space<vmem>>, %arg4: memref<1x2048xf32, #tpu.memory_space<vmem>>) attributes {dimension_semantics = [#tpu.dimension_semantics<parallel>], iteration_bounds = array<i64: 1>, scalar_prefetch = 0 : i64, scratch_operands = 0 : i64, tpu.core_type = #tpu.core_type<tc>, window_params = [{transform_indices = @transform_0, window_bounds = array<i64: 1, 2048>}, {transform_indices = @transform_1, window_bounds = array<i64: 1, 2048>}, {pipeline_mode = #tpu.pipeline_mode<synchronous>, transform_indices = @transform_2, window_bounds = array<i64: 1, 2048>}, {transform_indices = @transform_3, window_bounds = array<i64: 1, 2048>}]} {
    %c0 = arith.constant 0 : index
    %c0_0 = arith.constant 0 : index
    %0 = vector.load %arg3[%c0, %c0_0] : memref<1x2048xf32, #tpu.memory_space<vmem>>, vector<1x2048xf32>
    %c0_1 = arith.constant 0 : index
    %c0_2 = arith.constant 0 : index
    %1 = vector.load %arg1[%c0_1, %c0_2] : memref<1x2048xf32, #tpu.memory_space<vmem>>, vector<1x2048xf32>
    %c0_3 = arith.constant 0 : index
    %c0_4 = arith.constant 0 : index
    %2 = vector.load %arg2[%c0_3, %c0_4] : memref<1x2048xf32, #tpu.memory_space<vmem>>, vector<1x2048xf32>
    %3 = math.absf %1 : vector<1x2048xf32>
    %cst = arith.constant 0.000000e+00 : f32
    %4 = vector.broadcast %cst : f32 to vector<1x2048xf32>
    %5 = arith.subf %4, %3 : vector<1x2048xf32>
    %6 = math.exp %5 : vector<1x2048xf32>
    %cst_5 = arith.constant 1.000000e+00 : f32
    %7 = vector.broadcast %cst_5 : f32 to vector<1x2048xf32>
    %8 = arith.addf %7, %6 : vector<1x2048xf32>
    %9 = math.log %8 : vector<1x2048xf32>
    %cst_6 = arith.constant 0.000000e+00 : f32
    %10 = vector.broadcast %cst_6 : f32 to vector<1x2048xf32>
    %11 = arith.minimumf %1, %10 : vector<1x2048xf32>
    %12 = arith.subf %11, %9 : vector<1x2048xf32>
    %cst_7 = arith.constant 0.000000e+00 : f32
    %13 = vector.broadcast %cst_7 : f32 to vector<1x2048xf32>
    %14 = arith.subf %13, %1 : vector<1x2048xf32>
    %cst_8 = arith.constant 0.000000e+00 : f32
    %15 = vector.broadcast %cst_8 : f32 to vector<1x2048xf32>
    %16 = arith.minimumf %14, %15 : vector<1x2048xf32>
    %17 = arith.subf %16, %9 : vector<1x2048xf32>
    %18 = tpu.reciprocal %8 {approx = true} : vector<1x2048xf32> -> vector<1x2048xf32>
    %19 = arith.mulf %8, %18 : vector<1x2048xf32>
    %cst_9 = arith.constant 2.000000e+00 : f32
    %20 = vector.broadcast %cst_9 : f32 to vector<1x2048xf32>
    %21 = arith.subf %20, %19 : vector<1x2048xf32>
    %22 = arith.mulf %18, %21 : vector<1x2048xf32>
    %23 = arith.mulf %6, %22 : vector<1x2048xf32>
    %cst_10 = arith.constant 0.000000e+00 : f32
    %24 = vector.broadcast %cst_10 : f32 to vector<1x2048xf32>
    %25 = arith.cmpf oge, %1, %24 : vector<1x2048xf32>
    %26 = arith.select %25, %22, %23 : vector<1x2048xi1>, vector<1x2048xf32>
    %cst_11 = arith.constant 0.000000e+00 : f32
    %27 = vector.broadcast %cst_11 : f32 to vector<1x2048xf32>
    %28 = arith.cmpf oge, %1, %27 : vector<1x2048xf32>
    %29 = arith.select %28, %23, %22 : vector<1x2048xi1>, vector<1x2048xf32>
    %30 = arith.mulf %29, %29 : vector<1x2048xf32>
    %31 = arith.mulf %2, %12 : vector<1x2048xf32>
    %32 = arith.mulf %30, %31 : vector<1x2048xf32>
    %33 = arith.mulf %0, %32 : vector<1x2048xf32>
    %34 = arith.mulf %26, %26 : vector<1x2048xf32>
    %cst_12 = arith.constant 1.000000e+00 : f32
    %35 = vector.broadcast %cst_12 : f32 to vector<1x2048xf32>
    %36 = arith.subf %35, %2 : vector<1x2048xf32>
    %37 = arith.mulf %36, %17 : vector<1x2048xf32>
    %38 = arith.mulf %34, %37 : vector<1x2048xf32>
    %cst_13 = arith.constant 7.500000e-01 : f32
    %39 = vector.broadcast %cst_13 : f32 to vector<1x2048xf32>
    %40 = arith.mulf %39, %38 : vector<1x2048xf32>
    %41 = arith.addf %33, %40 : vector<1x2048xf32>
    %cst_14 = arith.constant 0.000000e+00 : f32
    %42 = vector.broadcast %cst_14 : f32 to vector<1x2048xf32>
    %43 = arith.subf %42, %41 : vector<1x2048xf32>
    %c0_15 = arith.constant 0 : index
    %c0_16 = arith.constant 0 : index
    %44 = vector.load %arg4[%c0_15, %c0_16] : memref<1x2048xf32, #tpu.memory_space<vmem>>, vector<1x2048xf32>
    tpu.vector_store %arg4[%c0_15, %c0_16], %43 {strides = array<i32>} : memref<1x2048xf32, #tpu.memory_space<vmem>>, vector<1x2048xf32>,
    return
  }
  func.func @transform_0(%arg0: i32) -> (i32, i32) {
    %c0_i32 = arith.constant 0 : i32
    %c0_i32_0 = arith.constant 0 : i32
    return %arg0, %c0_i32 : i32, i32
  }
  func.func @transform_1(%arg0: i32) -> (i32, i32) {
    %c0_i32 = arith.constant 0 : i32
    %c0_i32_0 = arith.constant 0 : i32
    return %arg0, %c0_i32 : i32, i32
  }
  func.func @transform_2(%arg0: i32) -> (i32, i32) {
    %c0_i32 = arith.constant 0 : i32
    %c0_i32_0 = arith.constant 0 : i32
    %c0_i32_1 = arith.constant 0 : i32
    return %c0_i32, %c0_i32_0 : i32, i32
  }
  func.func @transform_3(%arg0: i32) -> (i32, i32) {
    %c0_i32 = arith.constant 0 : i32
    %c0_i32_0 = arith.constant 0 : i32
    return %arg0, %c0_i32 : i32, i32
  }
}

</mosaic_0001>

<llo_original>
// kernel: tpu_custom_call.1
$region0: #{tpu_custom_call.1}
  #allocation0 [shape = 'u32[]', space=smem, size = 0x4, offset = 0x4, fixed_abs, tag = 'smem constant byte address 0x4 - core index']
  #allocation1 [shape = 'u32[144,128]{1,0:T(1,128)}', space=vmem, size = 0x12000, scoped, tag = 'internal scratch']
  %s0 = inlined_call_operand.hbm [shape: f32[1,2048], index: 0, kind: input, shape index: {}]
  %s1 = inlined_call_operand.hbm [shape: f32[1,2048], index: 1, kind: input, shape index: {}]
  %s2 = inlined_call_operand.hbm [shape: f32[1,2048], index: 2, kind: input, shape index: {}]
  %s3 = inlined_call_operand.hbm [shape: f32[1,2048], index: 3, kind: output, shape index: {}]
  %s4 = sld [smem:[#allocation0]]
  $region34: #{tpu_custom_call.1} parent=0
    _
  %s6 = ssub.s32 1, %s4
  %s7 = scalar_select 0, %s6, %s4
  $region1: #{tpu_custom_call.1} parent=0
    #allocation2 [shape = 'u8[8192]{0}', space=vmem, size = 0x2000, scoped, tag = 'input window, operand 0, single buffered']
    #allocation3 [shape = 's32[1]{0}', space=sflag, size = 0x4, scoped, tag = 'scoped memory for tpu_custom_call.1']
    #allocation4 [shape = 's32[1]{0}', space=sflag, size = 0x4, scoped, tag = 'scoped memory for tpu_custom_call.1']
    #allocation5 [shape = 'u8[8192]{0}', space=vmem, size = 0x2000, scoped, tag = 'input window, operand 1, single buffered']
    #allocation6 [shape = 's32[1]{0}', space=sflag, size = 0x4, scoped, tag = 'scoped memory for tpu_custom_call.1']
    #allocation7 [shape = 'u8[8192]{0}', space=vmem, size = 0x2000, scoped, tag = 'input window, operand 2, single buffered']
    #allocation8 [shape = 'u8[8192]{0}', space=vmem, size = 0x2000, scoped, tag = 'output window, operand 0, single buffered']
    %8 = vsyncpa [#allocation3], 0
    %9 = vsyncpa [#allocation6], 0
    %10 = vsyncpa [#allocation4], 0
    // Predicated region
    $region2: #{tpu_custom_call.1} parent=1 // pred_check
      _
    $region3: #{tpu_custom_call.1} parent=1 // pred_check_branch
      %12 = sbr.rel (0) target = $region5
    $region4: #{tpu_custom_call.1} parent=1 // pred_region
      %s14 = ssub.s32 256, 256
      %15 = vsyncadd [#allocation3], %s14
      %s17 = sshll.u32 [#allocation2], 4
      %s18 = int_to_ptr.vmem [resolvable:$true] %s17
      %20 = dma.hbm_to_vmem [thread:$0]  %s0, 256, %s18, [#allocation3]
    $region5: #{tpu_custom_call.1} parent=1 // pred_fallthru
      _
    // Predicated region
    $region6: #{tpu_custom_call.1} parent=1 // pred_check
      _
    $region7: #{tpu_custom_call.1} parent=1 // pred_check_branch
      %22 = sbr.rel (0) target = $region9
    $region8: #{tpu_custom_call.1} parent=1 // pred_region
      %s24 = ssub.s32 256, 256
      %25 = vsyncadd [#allocation6], %s24
      %s27 = sshll.u32 [#allocation5], 4
      %s28 = int_to_ptr.vmem [resolvable:$true] %s27
      %30 = dma.hbm_to_vmem [thread:$0]  %s1, 256, %s28, [#allocation6]
    $region9: #{tpu_custom_call.1} parent=1 // pred_fallthru
      _
    // Predicated region
    $region10: #{tpu_custom_call.1} parent=1 // pred_check
      _
    $region11: #{tpu_custom_call.1} parent=1 // pred_check_branch
      %32 = sbr.rel (0) target = $region13
    $region12: #{tpu_custom_call.1} parent=1 // pred_region
      %s34 = ssub.s32 256, 256
      %35 = vsyncadd [#allocation6], %s34
      %s37 = sshll.u32 [#allocation7], 4
      %s38 = int_to_ptr.vmem [resolvable:$true] %s37
      %40 = dma.hbm_to_vmem [thread:$0]  %s2, 256, %s38, [#allocation6]
    $region13: #{tpu_custom_call.1} parent=1 // pred_fallthru
      _
    // Predicated region
    $region14: #{tpu_custom_call.1} parent=1 // pred_check
      _
    $region15: #{tpu_custom_call.1} parent=1 // pred_check_branch
      %42 = sbr.rel (0) target = $region17
    $region16: #{tpu_custom_call.1} parent=1 // pred_region
      %43 = dma.done [#allocation3], 256
    $region17: #{tpu_custom_call.1} parent=1 // pred_fallthru
      _
    // Predicated region
    $region18: #{tpu_custom_call.1} parent=1 // pred_check
      _
    $region19: #{tpu_custom_call.1} parent=1 // pred_check_branch
      %45 = sbr.rel (0) target = $region21
    $region20: #{tpu_custom_call.1} parent=1 // pred_region
      %46 = dma.done [#allocation6], 256
    $region21: #{tpu_custom_call.1} parent=1 // pred_fallthru
      _
    // Predicated region
    $region22: #{tpu_custom_call.1} parent=1 // pred_check
      _
    $region23: #{tpu_custom_call.1} parent=1 // pred_check_branch
      %48 = sbr.rel (0) target = $region25
    $region24: #{tpu_custom_call.1} parent=1 // pred_region
      %49 = dma.done [#allocation6], 256
    $region25: #{tpu_custom_call.1} parent=1 // pred_fallthru
      _
    %v50 = vld [vmem:[#allocation7] sm:$0xff]
    %v51 = vld [vmem:[#allocation7 + $0x8] sm:$0xff]
    %v52 = vld [vmem:[#allocation2] sm:$0xff]
    %v53 = vld [vmem:[#allocation2 + $0x8] sm:$0xff]
    %v54 = vld [vmem:[#allocation5] sm:$0xff]
    %v55 = vld [vmem:[#allocation5 + $0x8] sm:$0xff]
    %v56 = vand.u32 2147483647, %v52
    %v57 = vand.u32 2147483647, %v53
    %v58 = vsub.f32 0.0, %v56
    %v59 = vsub.f32 0.0, %v57
    %v60 = vmul.f32 %v58, 1.442695
    %v61 = vpow.pop %v60
    %v62 = vmul.f32 %v59, 1.442695
    %v63 = vpow.pop %v62
    %v64 = vadd.f32 %v61, 1.0
    %v65 = vadd.f32 %v63, 1.0
    %v66 = vlog2.pop %v64
    %v67 = vmul.f32 %v66, 0.6931472
    %v68 = vlog2.pop %v65
    %v69 = vmul.f32 %v68, 0.6931472
    %v70 = vmin.f32 %v52, 0.0
    %v71 = vmin.f32 %v53, 0.0
    %v72 = vsub.f32 %v70, %v67
    %v73 = vsub.f32 %v71, %v69
    %v74 = vsub.f32 0.0, %v52
    %v75 = vsub.f32 0.0, %v53
    %v76 = vmin.f32 %v74, 0.0
    %v77 = vmin.f32 %v75, 0.0
    %v78 = vsub.f32 %v76, %v67
    %v79 = vsub.f32 %v77, %v69
    %v80 = vrcp.pop %v64
    %v81 = vrcp.pop %v65
    %v82 = vmul.f32 %v64, %v80
    %v83 = vmul.f32 %v65, %v81
    %v84 = vsub.f32 2.0, %v82
    %v85 = vsub.f32 2.0, %v83
    %v86 = vmul.f32 %v80, %v84
    %v87 = vmul.f32 %v81, %v85
    %v88 = vmul.f32 %v61, %v86
    %v89 = vmul.f32 %v63, %v87
    %vm90 = vcmp.ge.f32.partialorder %v52, 0.0
    %vm91 = vcmp.ge.f32.partialorder %v53, 0.0
    %v92 = vsel %vm90, %v86, %v88
    %v93 = vsel %vm91, %v87, %v89
    %v94 = vsel %vm90, %v88, %v86
    %v95 = vsel %vm91, %v89, %v87
    %v96 = vmul.f32 %v94, %v94
    %v97 = vmul.f32 %v95, %v95
    %v98 = vmul.f32 %v54, %v72
    %v99 = vmul.f32 %v55, %v73
    %v100 = vmul.f32 %v96, %v98
    %v101 = vmul.f32 %v97, %v99
    %v102 = vmul.f32 %v50, %v100
    %v103 = vmul.f32 %v51, %v101
    %v104 = vmul.f32 %v92, %v92
    %v105 = vmul.f32 %v93, %v93
    %v106 = vsub.f32 1.0, %v54
    %v107 = vsub.f32 1.0, %v55
    %v108 = vmul.f32 %v106, %v78
    %v109 = vmul.f32 %v107, %v79
    %v110 = vmul.f32 %v104, %v108
    %v111 = vmul.f32 %v105, %v109
    %v112 = vmul.f32 %v110, 0.75
    %v113 = vmul.f32 %v111, 0.75
    %v114 = vadd.f32 %v102, %v112
    %v115 = vadd.f32 %v103, %v113
    %v116 = vsub.f32 0.0, %v114
    %v117 = vsub.f32 0.0, %v115
    %118 = vst [vmem:[#allocation8] sm:$0xff] %v116
    %119 = vst [vmem:[#allocation8 + $0x8] sm:$0xff] %v117
    // Predicated region
    $region26: #{tpu_custom_call.1} parent=1 // pred_check
      _
    $region27: #{tpu_custom_call.1} parent=1 // pred_check_branch
      %121 = sbr.rel (0) target = $region29
    $region28: #{tpu_custom_call.1} parent=1 // pred_region
      %s123 = ssub.s32 256, 256
      %124 = vsyncadd [#allocation4], %s123
      %s126 = sshll.u32 [#allocation8], 4
      %s127 = int_to_ptr.vmem [resolvable:$true] %s126
      %129 = dma.vmem_to_hbm [thread:$0]  %s127, 256, %s3, [#allocation4]
    $region29: #{tpu_custom_call.1} parent=1 // pred_fallthru
      _
    // Predicated region
    $region30: #{tpu_custom_call.1} parent=1 // pred_check
      _
    $region31: #{tpu_custom_call.1} parent=1 // pred_check_branch
      %131 = sbr.rel (0) target = $region33
    $region32: #{tpu_custom_call.1} parent=1 // pred_region
      %132 = dma.done [#allocation4], 256
    $region33: #{tpu_custom_call.1} parent=1 // pred_fallthru
      _
    %133 = vsyncpa [#allocation3], 1
    %134 = vsyncpa [#allocation6], 1
    %135 = vsyncpa [#allocation4], 1

</llo_original>
